<compile_context>
chip_gen: v7x
topology: tpu7x:2x2x1
jax: 0.10.0
libtpu: 0.0.40
codegen_flags: <defaults>
</compile_context>

<pallas_src>
import jax
import jax.numpy as jnp
from jax import lax
from jax.experimental import pallas as pl
from jax.experimental.pallas import tpu as pltpu

HIDDEN = 64          # per-tower hidden width (fused hidden = 128)
FUSED_H = 2 * HIDDEN
NEG_BIG = -1e30      # finite "minus infinity": exp underflows to exactly 0


def _round_up(x, m):
    return ((x + m - 1) // m) * m


def _cdiv(a, b):
    return -(-a // b)


# --------------------------------------------------------------------------- #
# Kernel
# --------------------------------------------------------------------------- #
def ppo_fused_kernel(x_ref, w1_ref, b1_ref, w2_ref, b2_ref, w3_ref, b3_ref,
                     ones_ref, mask_ref, onehot_ref, out_ref):
    """One batch tile: fused actor+critic MLP -> lane-dense output slab."""
    cdt = w1_ref.dtype                     # compute dtype (f32 or bf16)
    x = x_ref[...]                         # already cast to cdt in the wrapper

    # layer 1 (fused 128-wide)
    h = jnp.dot(x, w1_ref[...], preferred_element_type=jnp.float32) + b1_ref[...]
    h = jnp.maximum(h, 0.0).astype(cdt)    # ReLU in f32, cast only the MXU operand
    # layer 2 (block-diagonal 128x128)
    h = jnp.dot(h, w2_ref[...], preferred_element_type=jnp.float32) + b2_ref[...]
    h = jnp.maximum(h, 0.0).astype(cdt)
    # layer 3 -> lanes [0:A] = actor logits, lane A = critic value, rest exact 0
    o = jnp.dot(h, w3_ref[...], preferred_element_type=jnp.float32) + b3_ref[...]

    # numerically-stable softmax over the real action lanes only
    logits = o + mask_ref[...]             # resident additive mask (no iota/select)
    m = jnp.max(logits, axis=-1, keepdims=True)   # only remaining XLU reduction
    e = jnp.exp(logits - m)                # masked lanes underflow to exactly 0

    # lane-sum on the MXU against a resident all-ones matrix; result is already
    # lane-broadcast.  HIGHEST precision keeps the f32 sum exact.
    denom = jnp.dot(e, ones_ref[...],
                    preferred_element_type=jnp.float32,
                    precision=lax.Precision.HIGHEST)
    r = pl.reciprocal(denom, approx=True)  # EUP vrcp (free slot)
    r = r * (2.0 - denom * r)              # one Newton-Raphson step -> ~f32 exact
    p = e * r                              # masked lanes stay exactly 0

    # lane-dense slab: policy in [0:A], raw value in lane A (p==0 there), 0 elsewhere
    out_ref[...] = p + o * onehot_ref[...]


# --------------------------------------------------------------------------- #
# Parameter packing (done once, NOT per call)
# --------------------------------------------------------------------------- #
def pack_params(p, action_size, compute_dtype=jnp.float32):
    """Fuse actor+critic weights into 128-wide matmul operands + resident consts."""
    S = p["aw1"].shape[0]
    out_w = _round_up(action_size + 1, 128)          # lane-dense output width

    w1 = jnp.concatenate([p["aw1"], p["cw1"]], axis=1)            # (S, 128)
    b1 = jnp.concatenate([p["ab1"], p["cb1"]], axis=1)            # (1, 128)

    w2 = jnp.zeros((FUSED_H, FUSED_H), jnp.float32)               # block-diag, exact zeros
    w2 = w2.at[:HIDDEN, :HIDDEN].set(p["aw2"]).at[HIDDEN:, HIDDEN:].set(p["cw2"])
    b2 = jnp.concatenate([p["ab2"], p["cb2"]], axis=1)            # (1, 128)

    w3 = jnp.zeros((FUSED_H, out_w), jnp.float32)
    w3 = w3.at[:HIDDEN, :action_size].set(p["aw3"])
    w3 = w3.at[HIDDEN:, action_size:action_size + 1].set(p["cw3"])
    b3 = jnp.zeros((1, out_w), jnp.float32)
    b3 = b3.at[:, :action_size].set(p["ab3"])
    b3 = b3.at[:, action_size:action_size + 1].set(p["cb3"])

    # resident epilogue constants (all kept f32 — they touch f32 accumulators)
    lanes = jnp.arange(out_w)
    mask = jnp.where(lanes < action_size, 0.0, NEG_BIG).astype(jnp.float32)[None, :]
    onehot = (lanes == action_size).astype(jnp.float32)[None, :]
    ones = jnp.ones((out_w, out_w), jnp.float32)      # MXU lane-sum operand

    return dict(
        w1=w1.astype(compute_dtype), b1=b1,           # biases stay f32 (added post-dot)
        w2=w2.astype(compute_dtype), b2=b2,
        w3=w3.astype(compute_dtype), b3=b3,
        ones=ones, mask=mask, onehot=onehot,
        action_size=action_size, out_w=out_w, state_size=S,
    )


# --------------------------------------------------------------------------- #
# Wrapper
# --------------------------------------------------------------------------- #
def ppo_forward(x, packed, *, tile_b=1024):
    """x: (B, state_size) float32.  packed: output of pack_params()."""
    B, S = x.shape
    A = packed["action_size"]
    out_w = packed["out_w"]
    assert S == packed["state_size"]
    cdt = packed["w1"].dtype

    # --- batch tiling: minimal padding, >=2 (even) grid steps when B allows so
    #     both v7x TensorCores get work; tb always a multiple of 8 (sublanes).
    nb = _cdiv(B, max(tile_b, 8))
    if B >= 16:
        nb = max(nb, 2)
    if nb > 1 and nb % 2:
        nb += 1
    tb = _round_up(_cdiv(B, nb), 8)
    B_pad = nb * tb

    x_p = x if B_pad == B else jnp.pad(x, ((0, B_pad - B), (0, 0)))
    x_p = x_p.astype(cdt)     # bf16 path: halves input DMA + removes in-kernel pack

    # NOTE: at tb=1024 total VMEM (double-buffered lane-padded x + out slab +
    # resident weights/ones) is ~2.7 MiB — well under every chip's scoped default.
    grid_spec = pltpu.PrefetchScalarGridSpec(
        num_scalar_prefetch=0,
        grid=(nb,),
        in_specs=[
            pl.BlockSpec((tb, S), lambda i: (i, 0)),            # streamed batch tile
            pl.BlockSpec((S, FUSED_H), lambda i: (0, 0)),       # resident weights
            pl.BlockSpec((1, FUSED_H), lambda i: (0, 0)),
            pl.BlockSpec((FUSED_H, FUSED_H), lambda i: (0, 0)),
            pl.BlockSpec((1, FUSED_H), lambda i: (0, 0)),
            pl.BlockSpec((FUSED_H, out_w), lambda i: (0, 0)),
            pl.BlockSpec((1, out_w), lambda i: (0, 0)),
            pl.BlockSpec((out_w, out_w), lambda i: (0, 0)),     # ones (MXU lane-sum)
            pl.BlockSpec((1, out_w), lambda i: (0, 0)),         # -inf mask
            pl.BlockSpec((1, out_w), lambda i: (0, 0)),         # one-hot value lane
        ],
        out_specs=pl.BlockSpec((tb, out_w), lambda i: (i, 0)),  # lane-dense slab
    )

    wbytes = jnp.dtype(cdt).itemsize
    w_elems = S * FUSED_H + FUSED_H * FUSED_H + FUSED_H * out_w
    cost = pl.CostEstimate(
        flops=2 * B_pad * (S * FUSED_H + FUSED_H * FUSED_H
                           + FUSED_H * out_w + out_w * out_w),
        transcendentals=2 * B_pad * out_w,                      # exp + vrcp
        bytes_accessed=(B_pad * S * wbytes + B_pad * out_w * 4
                        + w_elems * wbytes
                        + (out_w * out_w + 2 * FUSED_H + 3 * out_w) * 4),
    )

    slab = pl.pallas_call(
        ppo_fused_kernel,
        out_shape=jax.ShapeDtypeStruct((B_pad, out_w), jnp.float32),
        grid_spec=grid_spec,
        compiler_params=pltpu.CompilerParams(dimension_semantics=("parallel",)),
        cost_estimate=cost,
    )(x_p, packed["w1"], packed["b1"], packed["w2"], packed["b2"],
      packed["w3"], packed["b3"], packed["ones"], packed["mask"], packed["onehot"])

    # TODO(synk): on v5e, consuming the padded slab directly downstream (or a bf16
    # slab + separate f32 value column) would cut the dominant writeback traffic.
    policy = slab[:B, :A]
    value = slab[:B, A:A + 1]
    return policy, value


# --------------------------------------------------------------------------- #
# Init + reference (PyTorch nn.Linear-style init, weights stored transposed)
# --------------------------------------------------------------------------- #
def init_params(key, state_size, action_size, hidden=HIDDEN):
    ks = jax.random.split(key, 12)

    def lin(kw, kb, fan_in, fan_out):
        bound = 1.0 / jnp.sqrt(fan_in)
        w = jax.random.uniform(kw, (fan_in, fan_out), jnp.float32, -bound, bound)
        b = jax.random.uniform(kb, (1, fan_out), jnp.float32, -bound, bound)
        return w, b

    aw1, ab1 = lin(ks[0], ks[1], state_size, hidden)
    aw2, ab2 = lin(ks[2], ks[3], hidden, hidden)
    aw3, ab3 = lin(ks[4], ks[5], hidden, action_size)
    cw1, cb1 = lin(ks[6], ks[7], state_size, hidden)
    cw2, cb2 = lin(ks[8], ks[9], hidden, hidden)
    cw3, cb3 = lin(ks[10], ks[11], hidden, 1)
    return dict(aw1=aw1, ab1=ab1, aw2=aw2, ab2=ab2, aw3=aw3, ab3=ab3,
                cw1=cw1, cb1=cb1, cw2=cw2, cb2=cb2, cw3=cw3, cb3=cb3)


def ppo_reference(x, p):
    h = jnp.maximum(x @ p["aw1"] + p["ab1"], 0.0)
    h = jnp.maximum(h @ p["aw2"] + p["ab2"], 0.0)
    policy = jax.nn.softmax(h @ p["aw3"] + p["ab3"], axis=-1)
    c = jnp.maximum(x @ p["cw1"] + p["cb1"], 0.0)
    c = jnp.maximum(c @ p["cw2"] + p["cb2"], 0.0)
    value = c @ p["cw3"] + p["cb3"]
    return policy, value


if __name__ == "__main__":
    B, STATE_SIZE, ACTION_SIZE = 8, 8, 4
    key = jax.random.PRNGKey(0)
    k_param, k_x, k_x2 = jax.random.split(key, 3)
    raw = init_params(k_param, STATE_SIZE, ACTION_SIZE)
    x = jax.random.normal(k_x, (B, STATE_SIZE), jnp.float32)

    ref_policy, ref_value = ppo_reference(x, raw)

    # --- f32 fused kernel: strict check against reference ---
    packed_f32 = pack_params(raw, ACTION_SIZE, compute_dtype=jnp.float32)
    policy, value = ppo_forward(x, packed_f32)
    jax.block_until_ready((policy, value))
    assert policy.shape == (B, ACTION_SIZE) and value.shape == (B, 1)
    assert jnp.allclose(policy, ref_policy, atol=1e-5, rtol=1e-5)
    assert jnp.allclose(value, ref_value, atol=1e-5, rtol=1e-5)
    assert jnp.allclose(jnp.sum(policy, axis=-1), 1.0, atol=1e-5)

    # --- larger, non-multiple batch: exercises multi-tile (dual-TC) grid + padding ---
    B2 = 300
    x2 = jax.random.normal(k_x2, (B2, STATE_SIZE), jnp.float32)
    ref_p2, ref_v2 = ppo_reference(x2, raw)
    p2, v2 = ppo_forward(x2, packed_f32)
    jax.block_until_ready((p2, v2))
    assert p2.shape == (B2, ACTION_SIZE) and v2.shape == (B2, 1)
    assert jnp.allclose(p2, ref_p2, atol=1e-5, rtol=1e-5)
    assert jnp.allclose(v2, ref_v2, atol=1e-5, rtol=1e-5)

    # --- bf16 weights/activations (v5e/v6e/v7x MXU-friendly): loose check ---
    packed_bf16 = pack_params(raw, ACTION_SIZE, compute_dtype=jnp.bfloat16)
    p16, v16 = ppo_forward(x, packed_bf16)
    jax.block_until_ready((p16, v16))
    assert jnp.allclose(p16, ref_policy, atol=5e-2, rtol=5e-2)
    assert jnp.allclose(v16, ref_value, atol=5e-2, rtol=5e-2)

    print("KERNEL_OK")
</pallas_src>

<mosaic_0001>
module attributes {stable_mosaic.version = 11 : i64} {
  func.func @ppo_fused_kernel(%arg0: i32, %arg1: memref<8x8xf32, #tpu.memory_space<vmem>>, %arg2: memref<8x128xf32, #tpu.memory_space<vmem>>, %arg3: memref<1x128xf32, #tpu.memory_space<vmem>>, %arg4: memref<128x128xf32, #tpu.memory_space<vmem>>, %arg5: memref<1x128xf32, #tpu.memory_space<vmem>>, %arg6: memref<128x128xf32, #tpu.memory_space<vmem>>, %arg7: memref<1x128xf32, #tpu.memory_space<vmem>>, %arg8: memref<128x128xf32, #tpu.memory_space<vmem>>, %arg9: memref<1x128xf32, #tpu.memory_space<vmem>>, %arg10: memref<1x128xf32, #tpu.memory_space<vmem>>, %arg11: memref<8x128xf32, #tpu.memory_space<vmem>>) attributes {dimension_semantics = [#tpu.dimension_semantics<parallel>], iteration_bounds = array<i64: 1>, scalar_prefetch = 0 : i64, scratch_operands = 0 : i64, tpu.core_type = #tpu.core_type<tc>, window_params = [{transform_indices = @transform_0, window_bounds = array<i64: 8, 8>}, {pipeline_mode = #tpu.pipeline_mode<synchronous>, transform_indices = @transform_1, window_bounds = array<i64: 8, 128>}, {pipeline_mode = #tpu.pipeline_mode<synchronous>, transform_indices = @transform_2, window_bounds = array<i64: 1, 128>}, {pipeline_mode = #tpu.pipeline_mode<synchronous>, transform_indices = @transform_3, window_bounds = array<i64: 128, 128>}, {pipeline_mode = #tpu.pipeline_mode<synchronous>, transform_indices = @transform_4, window_bounds = array<i64: 1, 128>}, {pipeline_mode = #tpu.pipeline_mode<synchronous>, transform_indices = @transform_5, window_bounds = array<i64: 128, 128>}, {pipeline_mode = #tpu.pipeline_mode<synchronous>, transform_indices = @transform_6, window_bounds = array<i64: 1, 128>}, {pipeline_mode = #tpu.pipeline_mode<synchronous>, transform_indices = @transform_7, window_bounds = array<i64: 128, 128>}, {pipeline_mode = #tpu.pipeline_mode<synchronous>, transform_indices = @transform_8, window_bounds = array<i64: 1, 128>}, {pipeline_mode = #tpu.pipeline_mode<synchronous>, transform_indices = @transform_9, window_bounds = array<i64: 1, 128>}, {transform_indices = @transform_10, window_bounds = array<i64: 8, 128>}]} {
    %c0 = arith.constant 0 : index
    %c0_0 = arith.constant 0 : index
    %0 = vector.load %arg1[%c0, %c0_0] : memref<8x8xf32, #tpu.memory_space<vmem>>, vector<8x8xf32>
    %c0_1 = arith.constant 0 : index
    %c0_2 = arith.constant 0 : index
    %1 = vector.load %arg2[%c0_1, %c0_2] : memref<8x128xf32, #tpu.memory_space<vmem>>, vector<8x128xf32>
    %cst = arith.constant dense<0.000000e+00> : vector<8x128xf32>
    %2 = tpu.matmul %0, %1, %cst {dimension_numbers = #tpu.dot_dimension_numbers<[1], [0], [0], [1], [0, 0, 1, 1], [], []>} : vector<8x8xf32>, vector<8x128xf32>, vector<8x128xf32> -> vector<8x128xf32>
    %c0_3 = arith.constant 0 : index
    %c0_4 = arith.constant 0 : index
    %3 = vector.load %arg3[%c0_3, %c0_4] : memref<1x128xf32, #tpu.memory_space<vmem>>, vector<1x128xf32>
    %4 = vector.broadcast %3 : vector<1x128xf32> to vector<8x128xf32>
    %5 = arith.addf %2, %4 : vector<8x128xf32>
    %cst_5 = arith.constant 0.000000e+00 : f32
    %6 = vector.broadcast %cst_5 : f32 to vector<8x128xf32>
    %7 = arith.maximumf %5, %6 : vector<8x128xf32>
    %c0_6 = arith.constant 0 : index
    %c0_7 = arith.constant 0 : index
    %8 = vector.load %arg4[%c0_6, %c0_7] : memref<128x128xf32, #tpu.memory_space<vmem>>, vector<128x128xf32>
    %cst_8 = arith.constant dense<0.000000e+00> : vector<8x128xf32>
    %9 = tpu.matmul %7, %8, %cst_8 {dimension_numbers = #tpu.dot_dimension_numbers<[1], [0], [0], [1], [0, 0, 1, 1], [], []>} : vector<8x128xf32>, vector<128x128xf32>, vector<8x128xf32> -> vector<8x128xf32>
    %c0_9 = arith.constant 0 : index
    %c0_10 = arith.constant 0 : index
    %10 = vector.load %arg5[%c0_9, %c0_10] : memref<1x128xf32, #tpu.memory_space<vmem>>, vector<1x128xf32>
    %11 = vector.broadcast %10 : vector<1x128xf32> to vector<8x128xf32>
    %12 = arith.addf %9, %11 : vector<8x128xf32>
    %cst_11 = arith.constant 0.000000e+00 : f32
    %13 = vector.broadcast %cst_11 : f32 to vector<8x128xf32>
    %14 = arith.maximumf %12, %13 : vector<8x128xf32>
    %c0_12 = arith.constant 0 : index
    %c0_13 = arith.constant 0 : index
    %15 = vector.load %arg6[%c0_12, %c0_13] : memref<128x128xf32, #tpu.memory_space<vmem>>, vector<128x128xf32>
    %cst_14 = arith.constant dense<0.000000e+00> : vector<8x128xf32>
    %16 = tpu.matmul %14, %15, %cst_14 {dimension_numbers = #tpu.dot_dimension_numbers<[1], [0], [0], [1], [0, 0, 1, 1], [], []>} : vector<8x128xf32>, vector<128x128xf32>, vector<8x128xf32> -> vector<8x128xf32>
    %c0_15 = arith.constant 0 : index
    %c0_16 = arith.constant 0 : index
    %17 = vector.load %arg7[%c0_15, %c0_16] : memref<1x128xf32, #tpu.memory_space<vmem>>, vector<1x128xf32>
    %18 = vector.broadcast %17 : vector<1x128xf32> to vector<8x128xf32>
    %19 = arith.addf %16, %18 : vector<8x128xf32>
    %c0_17 = arith.constant 0 : index
    %c0_18 = arith.constant 0 : index
    %20 = vector.load %arg9[%c0_17, %c0_18] : memref<1x128xf32, #tpu.memory_space<vmem>>, vector<1x128xf32>
    %21 = vector.broadcast %20 : vector<1x128xf32> to vector<8x128xf32>
    %22 = arith.addf %19, %21 : vector<8x128xf32>
    %cst_19 = arith.constant dense<0xFF800000> : vector<8xf32>
    %23 = vector.multi_reduction <maximumf>, %22, %cst_19 [1] : vector<8x128xf32> to vector<8xf32>
    %24 = vector.shape_cast %23 : vector<8xf32> to vector<8x1xf32>
    %25 = vector.broadcast %24 : vector<8x1xf32> to vector<8x128xf32>
    %26 = arith.subf %22, %25 : vector<8x128xf32>
    %27 = math.exp %26 : vector<8x128xf32>
    %c0_20 = arith.constant 0 : index
    %c0_21 = arith.constant 0 : index
    %28 = vector.load %arg8[%c0_20, %c0_21] : memref<128x128xf32, #tpu.memory_space<vmem>>, vector<128x128xf32>
    %cst_22 = arith.constant dense<0.000000e+00> : vector<8x128xf32>
    %29 = tpu.matmul %27, %28, %cst_22 {dimension_numbers = #tpu.dot_dimension_numbers<[1], [0], [0], [1], [0, 0, 1, 1], [], []>, precision = #tpu.contract_precision<fp32>} : vector<8x128xf32>, vector<128x128xf32>, vector<8x128xf32> -> vector<8x128xf32>
    %30 = tpu.reciprocal %29 {approx = true} : vector<8x128xf32> -> vector<8x128xf32>
    %31 = arith.mulf %29, %30 : vector<8x128xf32>
    %cst_23 = arith.constant 2.000000e+00 : f32
    %32 = vector.broadcast %cst_23 : f32 to vector<8x128xf32>
    %33 = arith.subf %32, %31 : vector<8x128xf32>
    %34 = arith.mulf %30, %33 : vector<8x128xf32>
    %35 = arith.mulf %27, %34 : vector<8x128xf32>
    %c0_24 = arith.constant 0 : index
    %c0_25 = arith.constant 0 : index
    %36 = vector.load %arg10[%c0_24, %c0_25] : memref<1x128xf32, #tpu.memory_space<vmem>>, vector<1x128xf32>
    %37 = vector.broadcast %36 : vector<1x128xf32> to vector<8x128xf32>
    %38 = arith.mulf %19, %37 : vector<8x128xf32>
    %39 = arith.addf %35, %38 : vector<8x128xf32>
    %c0_26 = arith.constant 0 : index
    %c0_27 = arith.constant 0 : index
    %40 = vector.load %arg11[%c0_26, %c0_27] : memref<8x128xf32, #tpu.memory_space<vmem>>, vector<8x128xf32>
    tpu.vector_store %arg11[%c0_26, %c0_27], %39 {strides = array<i32>} : memref<8x128xf32, #tpu.memory_space<vmem>>, vector<8x128xf32>,
    return
  }
  func.func @transform_0(%arg0: i32) -> (i32, i32) {
    %c0_i32 = arith.constant 0 : i32
    %c0_i32_0 = arith.constant 0 : i32
    return %arg0, %c0_i32 : i32, i32
  }
  func.func @transform_1(%arg0: i32) -> (i32, i32) {
    %c0_i32 = arith.constant 0 : i32
    %c0_i32_0 = arith.constant 0 : i32
    %c0_i32_1 = arith.constant 0 : i32
    return %c0_i32, %c0_i32_0 : i32, i32
  }
  func.func @transform_2(%arg0: i32) -> (i32, i32) {
    %c0_i32 = arith.constant 0 : i32
    %c0_i32_0 = arith.constant 0 : i32
    %c0_i32_1 = arith.constant 0 : i32
    return %c0_i32, %c0_i32_0 : i32, i32
  }
  func.func @transform_3(%arg0: i32) -> (i32, i32) {
    %c0_i32 = arith.constant 0 : i32
    %c0_i32_0 = arith.constant 0 : i32
    %c0_i32_1 = arith.constant 0 : i32
    return %c0_i32, %c0_i32_0 : i32, i32
  }
  func.func @transform_4(%arg0: i32) -> (i32, i32) {
    %c0_i32 = arith.constant 0 : i32
    %c0_i32_0 = arith.constant 0 : i32
    %c0_i32_1 = arith.constant 0 : i32
    return %c0_i32, %c0_i32_0 : i32, i32
  }
  func.func @transform_5(%arg0: i32) -> (i32, i32) {
    %c0_i32 = arith.constant 0 : i32
    %c0_i32_0 = arith.constant 0 : i32
    %c0_i32_1 = arith.constant 0 : i32
    return %c0_i32, %c0_i32_0 : i32, i32
  }
  func.func @transform_6(%arg0: i32) -> (i32, i32) {
    %c0_i32 = arith.constant 0 : i32
    %c0_i32_0 = arith.constant 0 : i32
    %c0_i32_1 = arith.constant 0 : i32
    return %c0_i32, %c0_i32_0 : i32, i32
  }
  func.func @transform_7(%arg0: i32) -> (i32, i32) {
    %c0_i32 = arith.constant 0 : i32
    %c0_i32_0 = arith.constant 0 : i32
    %c0_i32_1 = arith.constant 0 : i32
    return %c0_i32, %c0_i32_0 : i32, i32
  }
  func.func @transform_8(%arg0: i32) -> (i32, i32) {
    %c0_i32 = arith.constant 0 : i32
    %c0_i32_0 = arith.constant 0 : i32
    %c0_i32_1 = arith.constant 0 : i32
    return %c0_i32, %c0_i32_0 : i32, i32
  }
  func.func @transform_9(%arg0: i32) -> (i32, i32) {
    %c0_i32 = arith.constant 0 : i32
    %c0_i32_0 = arith.constant 0 : i32
    %c0_i32_1 = arith.constant 0 : i32
    return %c0_i32, %c0_i32_0 : i32, i32
  }
  func.func @transform_10(%arg0: i32) -> (i32, i32) {
    %c0_i32 = arith.constant 0 : i32
    %c0_i32_0 = arith.constant 0 : i32
    return %arg0, %c0_i32 : i32, i32
  }
}

</mosaic_0001>

<llo_original>
// kernel: tpu_custom_call.1
$region0: #{tpu_custom_call.1}
  #allocation0 [shape = 'u32[]', space=smem, size = 0x4, offset = 0x4, fixed_abs, tag = 'smem constant byte address 0x4 - core index']
  #allocation1 [shape = 'u32[144,128]{1,0:T(1,128)}', space=vmem, size = 0x12000, scoped, tag = 'internal scratch']
  %s0 = inlined_call_operand.hbm [shape: f32[8,8], index: 0, kind: input, shape index: {}]
  %s1 = inlined_call_operand.hbm [shape: f32[8,128], index: 1, kind: input, shape index: {}]
  %s2 = inlined_call_operand.vmem [shape: f32[1,128], index: 2, kind: input, shape index: {}]
  %s3 = inlined_call_operand.hbm [shape: f32[128,128], index: 3, kind: input, shape index: {}]
  %s4 = inlined_call_operand.vmem [shape: f32[1,128], index: 4, kind: input, shape index: {}]
  %s5 = inlined_call_operand.hbm [shape: f32[128,128], index: 5, kind: input, shape index: {}]
  %s6 = inlined_call_operand.vmem [shape: f32[1,128], index: 6, kind: input, shape index: {}]
  %s7 = inlined_call_operand.hbm [shape: f32[128,128], index: 7, kind: input, shape index: {}]
  %s8 = inlined_call_operand.vmem [shape: f32[1,128], index: 8, kind: input, shape index: {}]
  %s9 = inlined_call_operand.vmem [shape: f32[1,128], index: 9, kind: input, shape index: {}]
  %s10 = inlined_call_operand.hbm [shape: f32[8,128], index: 10, kind: output, shape index: {}]
  %s11 = sld [smem:[#allocation0]]
  $region70: #{tpu_custom_call.1} parent=0
    _
  %s13 = ssub.s32 1, %s11
  %s14 = scalar_select 0, %s13, %s11
  $region1: #{tpu_custom_call.1} parent=0
    #allocation2 [shape = 'u8[4096]{0}', space=vmem, size = 0x1000, scoped, tag = 'input window, operand 0, single buffered']
    #allocation3 [shape = 's32[1]{0}', space=sflag, size = 0x4, scoped, tag = 'scoped memory for tpu_custom_call.1']
    #allocation4 [shape = 's32[1]{0}', space=sflag, size = 0x4, scoped, tag = 'scoped memory for tpu_custom_call.1']
    #allocation5 [shape = 'u8[4096]{0}', space=vmem, size = 0x1000, scoped, tag = 'input window, operand 1, single buffered']
    #allocation6 [shape = 's32[1]{0}', space=sflag, size = 0x4, scoped, tag = 'scoped memory for tpu_custom_call.1']
    #allocation7 [shape = 'u8[65536]{0}', space=vmem, size = 0x10000, scoped, tag = 'input window, operand 3, single buffered']
    #allocation8 [shape = 'u8[65536]{0}', space=vmem, size = 0x10000, scoped, tag = 'input window, operand 5, single buffered']
    #allocation9 [shape = 's32[1]{0}', space=sflag, size = 0x4, scoped, tag = 'scoped memory for tpu_custom_call.1']
    #allocation10 [shape = 'u8[65536]{0}', space=vmem, size = 0x10000, scoped, tag = 'input window, operand 7, single buffered']
    #allocation11 [shape = 'u8[4096]{0}', space=vmem, size = 0x1000, scoped, tag = 'output window, operand 0, single buffered']
    %15 = vsyncpa [#allocation3], 0
    %16 = vsyncpa [#allocation6], 0
    %17 = vsyncpa [#allocation9], 0
    %18 = vsyncpa [#allocation4], 0
    // Predicated region
    $region2: #{tpu_custom_call.1} parent=1 // pred_check
      _
    $region3: #{tpu_custom_call.1} parent=1 // pred_check_branch
      %20 = sbr.rel (0) target = $region5
    $region4: #{tpu_custom_call.1} parent=1 // pred_region
      %s22 = ssub.s32 128, 128
      %23 = vsyncadd [#allocation3], %s22
      %s25 = sshll.u32 [#allocation2], 4
      %s26 = int_to_ptr.vmem [resolvable:$true] %s25
      %28 = dma.hbm_to_vmem [thread:$0]  %s0, 128, %s26, [#allocation3]
    $region5: #{tpu_custom_call.1} parent=1 // pred_fallthru
      _
    // Predicated region
    $region6: #{tpu_custom_call.1} parent=1 // pred_check
      _
    $region7: #{tpu_custom_call.1} parent=1 // pred_check_branch
      %30 = sbr.rel (0) target = $region9
    $region8: #{tpu_custom_call.1} parent=1 // pred_region
      %s32 = ssub.s32 128, 128
      %33 = vsyncadd [#allocation6], %s32
      %s35 = sshll.u32 [#allocation5], 4
      %s36 = int_to_ptr.vmem [resolvable:$true] %s35
      %38 = dma.hbm_to_vmem [thread:$0]  %s1, 128, %s36, [#allocation6]
    $region9: #{tpu_custom_call.1} parent=1 // pred_fallthru
      _
    // Predicated region
    $region10: #{tpu_custom_call.1} parent=1 // pred_check
      _
    $region11: #{tpu_custom_call.1} parent=1 // pred_check_branch
      %40 = sbr.rel (0) target = $region13
    $region12: #{tpu_custom_call.1} parent=1 // pred_region
      _
    $region13: #{tpu_custom_call.1} parent=1 // pred_fallthru
      _
    // Predicated region
    $region14: #{tpu_custom_call.1} parent=1 // pred_check
      _
    $region15: #{tpu_custom_call.1} parent=1 // pred_check_branch
      %42 = sbr.rel (0) target = $region17
    $region16: #{tpu_custom_call.1} parent=1 // pred_region
      %s44 = ssub.s32 2048, 2048
      %45 = vsyncadd [#allocation6], %s44
      %s46 = sshll.u32 [#allocation7], 4
      %s47 = int_to_ptr.vmem [resolvable:$true] %s46
      %52 = dma.hbm_to_vmem [thread:$0]  %s3, 2048, %s47, [#allocation6], 128, 128, 8
    $region17: #{tpu_custom_call.1} parent=1 // pred_fallthru
      _
    // Predicated region
    $region18: #{tpu_custom_call.1} parent=1 // pred_check
      _
    $region19: #{tpu_custom_call.1} parent=1 // pred_check_branch
      %54 = sbr.rel (0) target = $region21
    $region20: #{tpu_custom_call.1} parent=1 // pred_region
      _
    $region21: #{tpu_custom_call.1} parent=1 // pred_fallthru
      _
    // Predicated region
    $region22: #{tpu_custom_call.1} parent=1 // pred_check
      _
    $region23: #{tpu_custom_call.1} parent=1 // pred_check_branch
      %56 = sbr.rel (0) target = $region25
    $region24: #{tpu_custom_call.1} parent=1 // pred_region
      %s58 = ssub.s32 2048, 2048
      %59 = vsyncadd [#allocation9], %s58
      %s60 = sshll.u32 [#allocation8], 4
      %s61 = int_to_ptr.vmem [resolvable:$true] %s60
      %66 = dma.hbm_to_vmem [thread:$0]  %s5, 2048, %s61, [#allocation9], 128, 128, 8
    $region25: #{tpu_custom_call.1} parent=1 // pred_fallthru
      _
    // Predicated region
    $region26: #{tpu_custom_call.1} parent=1 // pred_check
      _
    $region27: #{tpu_custom_call.1} parent=1 // pred_check_branch
      %68 = sbr.rel (0) target = $region29
    $region28: #{tpu_custom_call.1} parent=1 // pred_region
      _
    $region29: #{tpu_custom_call.1} parent=1 // pred_fallthru
      _
    // Predicated region
    $region30: #{tpu_custom_call.1} parent=1 // pred_check
      _
    $region31: #{tpu_custom_call.1} parent=1 // pred_check_branch
      %70 = sbr.rel (0) target = $region33
    $region32: #{tpu_custom_call.1} parent=1 // pred_region
      %s72 = ssub.s32 2048, 2048
      %73 = vsyncadd [#allocation9], %s72
      %s74 = sshll.u32 [#allocation10], 4
      %s75 = int_to_ptr.vmem [resolvable:$true] %s74
      %80 = dma.hbm_to_vmem [thread:$0]  %s7, 2048, %s75, [#allocation9], 128, 128, 8
    $region33: #{tpu_custom_call.1} parent=1 // pred_fallthru
      _
    // Predicated region
    $region34: #{tpu_custom_call.1} parent=1 // pred_check
      _
    $region35: #{tpu_custom_call.1} parent=1 // pred_check_branch
      %82 = sbr.rel (0) target = $region37
    $region36: #{tpu_custom_call.1} parent=1 // pred_region
      _
    $region37: #{tpu_custom_call.1} parent=1 // pred_fallthru
      _
    // Predicated region
    $region38: #{tpu_custom_call.1} parent=1 // pred_check
      _
    $region39: #{tpu_custom_call.1} parent=1 // pred_check_branch
      %84 = sbr.rel (0) target = $region41
    $region40: #{tpu_custom_call.1} parent=1 // pred_region
      _
    $region41: #{tpu_custom_call.1} parent=1 // pred_fallthru
      _
    // Predicated region
    $region42: #{tpu_custom_call.1} parent=1 // pred_check
      _
    $region43: #{tpu_custom_call.1} parent=1 // pred_check_branch
      %86 = sbr.rel (0) target = $region45
    $region44: #{tpu_custom_call.1} parent=1 // pred_region
      %87 = dma.done [#allocation3], 128
    $region45: #{tpu_custom_call.1} parent=1 // pred_fallthru
      _
    // Predicated region
    $region46: #{tpu_custom_call.1} parent=1 // pred_check
      _
    $region47: #{tpu_custom_call.1} parent=1 // pred_check_branch
      %89 = sbr.rel (0) target = $region49
    $region48: #{tpu_custom_call.1} parent=1 // pred_region
      %90 = dma.done [#allocation6], 128
    $region49: #{tpu_custom_call.1} parent=1 // pred_fallthru
      _
    // Predicated region
    $region50: #{tpu_custom_call.1} parent=1 // pred_check
      _
    $region51: #{tpu_custom_call.1} parent=1 // pred_check_branch
      %92 = sbr.rel (0) target = $region53
    $region52: #{tpu_custom_call.1} parent=1 // pred_region
      %93 = dma.done [#allocation6], 2048
    $region53: #{tpu_custom_call.1} parent=1 // pred_fallthru
      _
    // Predicated region
    $region54: #{tpu_custom_call.1} parent=1 // pred_check
      _
    $region55: #{tpu_custom_call.1} parent=1 // pred_check_branch
      %95 = sbr.rel (0) target = $region57
    $region56: #{tpu_custom_call.1} parent=1 // pred_region
      %96 = dma.done [#allocation9], 2048
    $region57: #{tpu_custom_call.1} parent=1 // pred_fallthru
      _
    // Predicated region
    $region58: #{tpu_custom_call.1} parent=1 // pred_check
      _
    $region59: #{tpu_custom_call.1} parent=1 // pred_check_branch
      %98 = sbr.rel (0) target = $region61
    $region60: #{tpu_custom_call.1} parent=1 // pred_region
      %99 = dma.done [#allocation9], 2048
    $region61: #{tpu_custom_call.1} parent=1 // pred_fallthru
      _
    %v100 = vld [vmem:[#allocation2] sm:$0xff]
    %v101 = vld [vmem:[#allocation5] sm:$0xff]
    %v102 = vld [vmem:[%s2] sm:$0x1]
    %v104 = vlaneseq
    %v105 = vshrl.u32 %v104, 7
    %v106 = vsub.s32 0, %v105
    %v107 = vrot.slane %v102, %v106
    %vm109 = vcmask 64512
    %v111 = vsel %vm109, %v100, 0
    %113 = vmatprep.subr.mxu0 0.0
    %114 = vmatpush1.msra.mxu0 %v101
    %115 = vmatprep.subr.mxu0 0.0
    %116 = vmatpush1.msra.mxu0 0.0
    %117 = vmatprep.subr.mxu0 0.0
    %118 = vmatpush1.msra.mxu0 0.0
    %119 = vmatprep.subr.mxu0 0.0
    %120 = vmatpush1.msra.mxu0 0.0
    %121 = vmatprep.subr.mxu0 0.0
    %122 = vmatpush1.msra.mxu0 0.0
    %123 = vmatprep.subr.mxu0 0.0
    %124 = vmatpush1.msra.mxu0 0.0
    %125 = vmatprep.subr.mxu0 0.0
    %126 = vmatpush1.msra.mxu0 0.0
    %127 = vmatprep.subr.mxu0 0.0
    %128 = vmatpush1.msra.mxu0 0.0
    %129 = vmatprep.subr.mxu0 0.0
    %130 = vmatpush1.msra.mxu0 0.0
    %131 = vmatprep.subr.mxu0 0.0
    %132 = vmatpush1.msra.mxu0 0.0
    %133 = vmatprep.subr.mxu0 0.0
    %134 = vmatpush1.msra.mxu0 0.0
    %135 = vmatprep.subr.mxu0 0.0
    %136 = vmatpush1.msra.mxu0 0.0
    %137 = vmatprep.subr.mxu0 0.0
    %138 = vmatpush1.msra.mxu0 0.0
    %139 = vmatprep.subr.mxu0 0.0
    %140 = vmatpush1.msra.mxu0 0.0
    %141 = vmatprep.subr.mxu0 0.0
    %142 = vmatpush1.msra.mxu0 0.0
    %143 = vmatprep.subr.mxu0 0.0
    %144 = vmatpush1.msra.mxu0 0.0
    %145 = vmatprep.subr.mxu0 0.0
    %146 = vmatpush1.msra.mxu0 0.0
    %147 = vmatprep.subr.mxu0 0.0
    %148 = vmatpush1.msra.mxu0 0.0
    %149 = vmatprep.subr.mxu0 0.0
    %150 = vmatpush1.msra.mxu0 0.0
    %151 = vmatprep.subr.mxu0 0.0
    %152 = vmatpush1.msra.mxu0 0.0
    %153 = vmatprep.subr.mxu0 0.0
    %154 = vmatpush1.msra.mxu0 0.0
    %155 = vmatprep.subr.mxu0 0.0
    %156 = vmatpush1.msra.mxu0 0.0
    %157 = vmatprep.subr.mxu0 0.0
    %158 = vmatpush1.msra.mxu0 0.0
    %159 = vmatprep.subr.mxu0 0.0
    %160 = vmatpush1.msra.mxu0 0.0
    %161 = vmatprep.subr.mxu0 0.0
    %162 = vmatpush1.msra.mxu0 0.0
    %163 = vmatprep.subr.mxu0 0.0
    %164 = vmatpush1.msra.mxu0 0.0
    %165 = vmatprep.subr.mxu0 0.0
    %166 = vmatpush1.msra.mxu0 0.0
    %167 = vmatprep.subr.mxu0 0.0
    %168 = vmatpush1.msra.mxu0 0.0
    %169 = vmatprep.subr.mxu0 0.0
    %170 = vmatpush1.msra.mxu0 0.0
    %171 = vmatprep.subr.mxu0 0.0
    %172 = vmatpush1.msra.mxu0 0.0
    %173 = vmatprep.subr.mxu0 0.0
    %174 = vmatpush1.msra.mxu0 0.0
    %175 = vmatprep.subr.mxu0 0.0
    %176 = vmatpush1.msra.mxu0 0.0
    %177 = vmatprep.mubr.f32.mxu0 0.0
    %178 = vmatmul.mubr.f32.gmra.mrb[0].mxu0 %v111
    %v179 = vpop.f32.mrb[0].mxu0
    %v180 = vadd.f32 %v107, %v179
    %v181 = vpop.f32.mrb[0].mxu0
    %182 = vdwg.mxu0
    %v183 = vmax.f32 %v180, 0.0
    %v184 = vld [vmem:[#allocation7] sm:$0xff]
    %v185 = vld [vmem:[#allocation7 + $0x8] sm:$0xff]
    %v186 = vld [vmem:[#allocation7 + $0x10] sm:$0xff]
    %v187 = vld [vmem:[#allocation7 + $0x18] sm:$0xff]
    %v188 = vld [vmem:[#allocation7 + $0x20] sm:$0xff]
    %v189 = vld [vmem:[#allocation7 + $0x28] sm:$0xff]
    %v190 = vld [vmem:[#allocation7 + $0x30] sm:$0xff]
    %v191 = vld [vmem:[#allocation7 + $0x38] sm:$0xff]
    %v192 = vld [vmem:[#allocation7 + $0x40] sm:$0xff]
    %v193 = vld [vmem:[#allocation7 + $0x48] sm:$0xff]
    %v194 = vld [vmem:[#allocation7 + $0x50] sm:$0xff]
    %v195 = vld [vmem:[#allocation7 + $0x58] sm:$0xff]
    %v196 = vld [vmem:[#allocation7 + $0x60] sm:$0xff]
    %v197 = vld [vmem:[#allocation7 + $0x68] sm:$0xff]
    %v198 = vld [vmem:[#allocation7 + $0x70] sm:$0xff]
    %v199 = vld [vmem:[#allocation7 + $0x78] sm:$0xff]
    %v200 = vld [vmem:[%s4] sm:$0x1]
    %v202 = vlaneseq
    %v203 = vshrl.u32 %v202, 7
    %v204 = vsub.s32 0, %v203
    %v205 = vrot.slane %v200, %v204
    %207 = vmatprep.subr.mxu0 0.0
    %208 = vmatpush1.msra.mxu0 %v184
    %209 = vmatprep.subr.mxu0 0.0
    %210 = vmatpush1.msra.mxu0 %v185
    %211 = vmatprep.subr.mxu0 0.0
    %212 = vmatpush1.msra.mxu0 %v186
    %213 = vmatprep.subr.mxu0 0.0
    %214 = vmatpush1.msra.mxu0 %v187
    %215 = vmatprep.subr.mxu0 0.0
    %216 = vmatpush1.msra.mxu0 %v188
    %217 = vmatprep.subr.mxu0 0.0
    %218 = vmatpush1.msra.mxu0 %v189
    %219 = vmatprep.subr.mxu0 0.0
    %220 = vmatpush1.msra.mxu0 %v190
    %221 = vmatprep.subr.mxu0 0.0
    %222 = vmatpush1.msra.mxu0 %v191
    %223 = vmatprep.subr.mxu0 0.0
    %224 = vmatpush1.msra.mxu0 %v192
    %225 = vmatprep.subr.mxu0 0.0
    %226 = vmatpush1.msra.mxu0 %v193
    %227 = vmatprep.subr.mxu0 0.0
    %228 = vmatpush1.msra.mxu0 %v194
    %229 = vmatprep.subr.mxu0 0.0
    %230 = vmatpush1.msra.mxu0 %v195
    %231 = vmatprep.subr.mxu0 0.0
    %232 = vmatpush1.msra.mxu0 %v196
    %233 = vmatprep.subr.mxu0 0.0
    %234 = vmatpush1.msra.mxu0 %v197
    %235 = vmatprep.subr.mxu0 0.0
    %236 = vmatpush1.msra.mxu0 %v198
    %237 = vmatprep.subr.mxu0 0.0
    %238 = vmatpush1.msra.mxu0 %v199
    %239 = vmatprep.subr.mxu0 0.0
    %240 = vmatpush1.msra.mxu0 0.0
    %241 = vmatprep.subr.mxu0 0.0
    %242 = vmatpush1.msra.mxu0 0.0
    %243 = vmatprep.subr.mxu0 0.0
    %244 = vmatpush1.msra.mxu0 0.0
    %245 = vmatprep.subr.mxu0 0.0
    %246 = vmatpush1.msra.mxu0 0.0
    %247 = vmatprep.subr.mxu0 0.0
    %248 = vmatpush1.msra.mxu0 0.0
    %249 = vmatprep.subr.mxu0 0.0
    %250 = vmatpush1.msra.mxu0 0.0
    %251 = vmatprep.subr.mxu0 0.0
    %252 = vmatpush1.msra.mxu0 0.0
    %253 = vmatprep.subr.mxu0 0.0
    %254 = vmatpush1.msra.mxu0 0.0
    %255 = vmatprep.subr.mxu0 0.0
    %256 = vmatpush1.msra.mxu0 0.0
    %257 = vmatprep.subr.mxu0 0.0
    %258 = vmatpush1.msra.mxu0 0.0
    %259 = vmatprep.subr.mxu0 0.0
    %260 = vmatpush1.msra.mxu0 0.0
    %261 = vmatprep.subr.mxu0 0.0
    %262 = vmatpush1.msra.mxu0 0.0
    %263 = vmatprep.subr.mxu0 0.0
    %264 = vmatpush1.msra.mxu0 0.0
    %265 = vmatprep.subr.mxu0 0.0
    %266 = vmatpush1.msra.mxu0 0.0
    %267 = vmatprep.subr.mxu0 0.0
    %268 = vmatpush1.msra.mxu0 0.0
    %269 = vmatprep.subr.mxu0 0.0
    %270 = vmatpush1.msra.mxu0 0.0
    %271 = vmatprep.mubr.f32.mxu0 0.0
    %272 = vmatmul.mubr.f32.gmra.mrb[0].mxu0 %v183
    %v273 = vpop.f32.mrb[0].mxu0
    %v274 = vadd.f32 %v205, %v273
    %v275 = vpop.f32.mrb[0].mxu0
    %276 = vdwg.mxu0
    %v277 = vmax.f32 %v274, 0.0
    %v278 = vld [vmem:[#allocation8] sm:$0xff]
    %v279 = vld [vmem:[#allocation8 + $0x8] sm:$0xff]
    %v280 = vld [vmem:[#allocation8 + $0x10] sm:$0xff]
    %v281 = vld [vmem:[#allocation8 + $0x18] sm:$0xff]
    %v282 = vld [vmem:[#allocation8 + $0x20] sm:$0xff]
    %v283 = vld [vmem:[#allocation8 + $0x28] sm:$0xff]
    %v284 = vld [vmem:[#allocation8 + $0x30] sm:$0xff]
    %v285 = vld [vmem:[#allocation8 + $0x38] sm:$0xff]
    %v286 = vld [vmem:[#allocation8 + $0x40] sm:$0xff]
    %v287 = vld [vmem:[#allocation8 + $0x48] sm:$0xff]
    %v288 = vld [vmem:[#allocation8 + $0x50] sm:$0xff]
    %v289 = vld [vmem:[#allocation8 + $0x58] sm:$0xff]
    %v290 = vld [vmem:[#allocation8 + $0x60] sm:$0xff]
    %v291 = vld [vmem:[#allocation8 + $0x68] sm:$0xff]
    %v292 = vld [vmem:[#allocation8 + $0x70] sm:$0xff]
    %v293 = vld [vmem:[#allocation8 + $0x78] sm:$0xff]
    %v294 = vld [vmem:[%s6] sm:$0x1]
    %v296 = vlaneseq
    %v297 = vshrl.u32 %v296, 7
    %v298 = vsub.s32 0, %v297
    %v299 = vrot.slane %v294, %v298
    %301 = vmatprep.subr.mxu0 0.0
    %302 = vmatpush1.msra.mxu0 %v278
    %303 = vmatprep.subr.mxu0 0.0
    %304 = vmatpush1.msra.mxu0 %v279
    %305 = vmatprep.subr.mxu0 0.0
    %306 = vmatpush1.msra.mxu0 %v280
    %307 = vmatprep.subr.mxu0 0.0
    %308 = vmatpush1.msra.mxu0 %v281
    %309 = vmatprep.subr.mxu0 0.0
    %310 = vmatpush1.msra.mxu0 %v282
    %311 = vmatprep.subr.mxu0 0.0
    %312 = vmatpush1.msra.mxu0 %v283
    %313 = vmatprep.subr.mxu0 0.0
    %314 = vmatpush1.msra.mxu0 %v284
    %315 = vmatprep.subr.mxu0 0.0
    %316 = vmatpush1.msra.mxu0 %v285
    %317 = vmatprep.subr.mxu0 0.0
    %318 = vmatpush1.msra.mxu0 %v286
    %319 = vmatprep.subr.mxu0 0.0
    %320 = vmatpush1.msra.mxu0 %v287
    %321 = vmatprep.subr.mxu0 0.0
    %322 = vmatpush1.msra.mxu0 %v288
    %323 = vmatprep.subr.mxu0 0.0
    %324 = vmatpush1.msra.mxu0 %v289
    %325 = vmatprep.subr.mxu0 0.0
    %326 = vmatpush1.msra.mxu0 %v290
    %327 = vmatprep.subr.mxu0 0.0
    %328 = vmatpush1.msra.mxu0 %v291
    %329 = vmatprep.subr.mxu0 0.0
    %330 = vmatpush1.msra.mxu0 %v292
    %331 = vmatprep.subr.mxu0 0.0
    %332 = vmatpush1.msra.mxu0 %v293
    %333 = vmatprep.subr.mxu0 0.0
    %334 = vmatpush1.msra.mxu0 0.0
    %335 = vmatprep.subr.mxu0 0.0
    %336 = vmatpush1.msra.mxu0 0.0
    %337 = vmatprep.subr.mxu0 0.0
    %338 = vmatpush1.msra.mxu0 0.0
    %339 = vmatprep.subr.mxu0 0.0
    %340 = vmatpush1.msra.mxu0 0.0
    %341 = vmatprep.subr.mxu0 0.0
    %342 = vmatpush1.msra.mxu0 0.0
    %343 = vmatprep.subr.mxu0 0.0
    %344 = vmatpush1.msra.mxu0 0.0
    %345 = vmatprep.subr.mxu0 0.0
    %346 = vmatpush1.msra.mxu0 0.0
    %347 = vmatprep.subr.mxu0 0.0
    %348 = vmatpush1.msra.mxu0 0.0
    %349 = vmatprep.subr.mxu0 0.0
    %350 = vmatpush1.msra.mxu0 0.0
    %351 = vmatprep.subr.mxu0 0.0
    %352 = vmatpush1.msra.mxu0 0.0
    %353 = vmatprep.subr.mxu0 0.0
    %354 = vmatpush1.msra.mxu0 0.0
    %355 = vmatprep.subr.mxu0 0.0
    %356 = vmatpush1.msra.mxu0 0.0
    %357 = vmatprep.subr.mxu0 0.0
    %358 = vmatpush1.msra.mxu0 0.0
    %359 = vmatprep.subr.mxu0 0.0
    %360 = vmatpush1.msra.mxu0 0.0
    %361 = vmatprep.subr.mxu0 0.0
    %362 = vmatpush1.msra.mxu0 0.0
    %363 = vmatprep.subr.mxu0 0.0
    %364 = vmatpush1.msra.mxu0 0.0
    %365 = vmatprep.mubr.f32.mxu0 0.0
    %366 = vmatmul.mubr.f32.gmra.mrb[0].mxu0 %v277
    %v367 = vpop.f32.mrb[0].mxu0
    %v368 = vadd.f32 %v299, %v367
    %v369 = vpop.f32.mrb[0].mxu0
    %370 = vdwg.mxu0
    %v371 = vld [vmem:[%s8] sm:$0x1]
    %v373 = vlaneseq
    %v374 = vshrl.u32 %v373, 7
    %v375 = vsub.s32 0, %v374
    %v376 = vrot.slane %v371, %v375
    %v378 = vadd.f32 %v368, %v376
    %379 = vmax.xlane.f32.xlu0 %v378
    %v380 = vpop.xlane.xlu0 %379
    %v381 = vsub.f32 %v378, %v380
    %v382 = vmul.f32 %v381, 1.442695
    %v383 = vpow.pop %v382
    %v384 = vld [vmem:[#allocation10] sm:$0xff]
    %v385 = vld [vmem:[#allocation10 + $0x8] sm:$0xff]
    %v386 = vld [vmem:[#allocation10 + $0x10] sm:$0xff]
    %v387 = vld [vmem:[#allocation10 + $0x18] sm:$0xff]
    %v388 = vld [vmem:[#allocation10 + $0x20] sm:$0xff]
    %v389 = vld [vmem:[#allocation10 + $0x28] sm:$0xff]
    %v390 = vld [vmem:[#allocation10 + $0x30] sm:$0xff]
    %v391 = vld [vmem:[#allocation10 + $0x38] sm:$0xff]
    %v392 = vld [vmem:[#allocation10 + $0x40] sm:$0xff]
    %v393 = vld [vmem:[#allocation10 + $0x48] sm:$0xff]
    %v394 = vld [vmem:[#allocation10 + $0x50] sm:$0xff]
    %v395 = vld [vmem:[#allocation10 + $0x58] sm:$0xff]
    %v396 = vld [vmem:[#allocation10 + $0x60] sm:$0xff]
    %v397 = vld [vmem:[#allocation10 + $0x68] sm:$0xff]
    %v398 = vld [vmem:[#allocation10 + $0x70] sm:$0xff]
    %v399 = vld [vmem:[#allocation10 + $0x78] sm:$0xff]
    %400 = vmatprep.subr.mxu0 0.0
    %v401 = vand.u32 %v384, 4294901760
    %402 = vmatpush1.msra.mxu0 %v401
    %403 = vmatprep.subr.mxu0 0.0
    %v404 = vand.u32 %v385, 4294901760
    %405 = vmatpush1.msra.mxu0 %v404
    %406 = vmatprep.subr.mxu0 0.0
    %v407 = vand.u32 %v386, 4294901760
    %408 = vmatpush1.msra.mxu0 %v407
    %409 = vmatprep.subr.mxu0 0.0
    %v410 = vand.u32 %v387, 4294901760
    %411 = vmatpush1.msra.mxu0 %v410
    %412 = vmatprep.subr.mxu0 0.0
    %v413 = vand.u32 %v388, 4294901760
    %414 = vmatpush1.msra.mxu0 %v413
    %415 = vmatprep.subr.mxu0 0.0
    %v416 = vand.u32 %v389, 4294901760
    %417 = vmatpush1.msra.mxu0 %v416
    %418 = vmatprep.subr.mxu0 0.0
    %v419 = vand.u32 %v390, 4294901760
    %420 = vmatpush1.msra.mxu0 %v419
    %421 = vmatprep.subr.mxu0 0.0
    %v422 = vand.u32 %v391, 4294901760
    %423 = vmatpush1.msra.mxu0 %v422
    %424 = vmatprep.subr.mxu0 0.0
    %v425 = vand.u32 %v392, 4294901760
    %426 = vmatpush1.msra.mxu0 %v425
    %427 = vmatprep.subr.mxu0 0.0
    %v428 = vand.u32 %v393, 4294901760
    %429 = vmatpush1.msra.mxu0 %v428
    %430 = vmatprep.subr.mxu0 0.0
    %v431 = vand.u32 %v394, 4294901760
    %432 = vmatpush1.msra.mxu0 %v431
    %433 = vmatprep.subr.mxu0 0.0
    %v434 = vand.u32 %v395, 4294901760
    %435 = vmatpush1.msra.mxu0 %v434
    %436 = vmatprep.subr.mxu0 0.0
    %v437 = vand.u32 %v396, 4294901760
    %438 = vmatpush1.msra.mxu0 %v437
    %439 = vmatprep.subr.mxu0 0.0
    %v440 = vand.u32 %v397, 4294901760
    %441 = vmatpush1.msra.mxu0 %v440
    %442 = vmatprep.subr.mxu0 0.0
    %v443 = vand.u32 %v398, 4294901760
    %444 = vmatpush1.msra.mxu0 %v443
    %445 = vmatprep.subr.mxu0 0.0
    %v446 = vand.u32 %v399, 4294901760
    %447 = vmatpush1.msra.mxu0 %v446
    %448 = vmatprep.subr.mxu0 0.0
    %449 = vmatpush1.msra.mxu0 0.0
    %450 = vmatprep.subr.mxu0 0.0
    %451 = vmatpush1.msra.mxu0 0.0
    %452 = vmatprep.subr.mxu0 0.0
    %453 = vmatpush1.msra.mxu0 0.0
    %454 = vmatprep.subr.mxu0 0.0
    %455 = vmatpush1.msra.mxu0 0.0
    %456 = vmatprep.subr.mxu0 0.0
    %457 = vmatpush1.msra.mxu0 0.0
    %458 = vmatprep.subr.mxu0 0.0
    %459 = vmatpush1.msra.mxu0 0.0
    %460 = vmatprep.subr.mxu0 0.0
    %461 = vmatpush1.msra.mxu0 0.0
    %462 = vmatprep.subr.mxu0 0.0
    %463 = vmatpush1.msra.mxu0 0.0
    %464 = vmatprep.subr.mxu0 0.0
    %465 = vmatpush1.msra.mxu0 0.0
    %466 = vmatprep.subr.mxu0 0.0
    %467 = vmatpush1.msra.mxu0 0.0
    %468 = vmatprep.subr.mxu0 0.0
    %469 = vmatpush1.msra.mxu0 0.0
    %470 = vmatprep.subr.mxu0 0.0
    %471 = vmatpush1.msra.mxu0 0.0
    %472 = vmatprep.subr.mxu0 0.0
    %473 = vmatpush1.msra.mxu0 0.0
    %474 = vmatprep.subr.mxu0 0.0
    %475 = vmatpush1.msra.mxu0 0.0
    %476 = vmatprep.subr.mxu0 0.0
    %477 = vmatpush1.msra.mxu0 0.0
    %478 = vmatprep.subr.mxu0 0.0
    %479 = vmatpush1.msra.mxu0 0.0
    %480 = vmatprep.mubr.f32.mxu0 0.0
    %v481 = vand.u32 %v383, 4294901760
    %v482 = vsub.f32 %v383, %v481
    %v483 = vand.u32 %v482, 4294901760
    %v484 = vsub.f32 %v482, %v483
    %v485 = vand.u32 %v484, 4294901760
    %486 = vmatmul.mubr.f32.gmra.mrb[0].mxu0 %v485
    %v487 = vpop.f32.mrb[0].mxu0
    %v488 = vadd.f32 0.0, %v487
    %v489 = vpop.f32.mrb[0].mxu0
    %490 = vdwg.mxu0
    %491 = vmatprep.subr.mxu0 0.0
    %v492 = vand.u32 %v384, 4294901760
    %v493 = vsub.f32 %v384, %v492
    %v494 = vand.u32 %v493, 4294901760
    %v495 = vsub.f32 %v493, %v494
    %v496 = vand.u32 %v495, 4294901760
    %497 = vmatpush1.msra.mxu0 %v496
    %498 = vmatprep.subr.mxu0 0.0
    %v499 = vand.u32 %v385, 4294901760
    %v500 = vsub.f32 %v385, %v499
    %v501 = vand.u32 %v500, 4294901760
    %v502 = vsub.f32 %v500, %v501
    %v503 = vand.u32 %v502, 4294901760
    %504 = vmatpush1.msra.mxu0 %v503
    %505 = vmatprep.subr.mxu0 0.0
    %v506 = vand.u32 %v386, 4294901760
    %v507 = vsub.f32 %v386, %v506
    %v508 = vand.u32 %v507, 4294901760
    %v509 = vsub.f32 %v507, %v508
    %v510 = vand.u32 %v509, 4294901760
    %511 = vmatpush1.msra.mxu0 %v510
    %512 = vmatprep.subr.mxu0 0.0
    %v513 = vand.u32 %v387, 4294901760
    %v514 = vsub.f32 %v387, %v513
    %v515 = vand.u32 %v514, 4294901760
    %v516 = vsub.f32 %v514, %v515
    %v517 = vand.u32 %v516, 4294901760
    %518 = vmatpush1.msra.mxu0 %v517
    %519 = vmatprep.subr.mxu0 0.0
    %v520 = vand.u32 %v388, 4294901760
    %v521 = vsub.f32 %v388, %v520
    %v522 = vand.u32 %v521, 4294901760
    %v523 = vsub.f32 %v521, %v522
    %v524 = vand.u32 %v523, 4294901760
    %525 = vmatpush1.msra.mxu0 %v524
    %526 = vmatprep.subr.mxu0 0.0
    %v527 = vand.u32 %v389, 4294901760
    %v528 = vsub.f32 %v389, %v527
    %v529 = vand.u32 %v528, 4294901760
    %v530 = vsub.f32 %v528, %v529
    %v531 = vand.u32 %v530, 4294901760
    %532 = vmatpush1.msra.mxu0 %v531
    %533 = vmatprep.subr.mxu0 0.0
    %v534 = vand.u32 %v390, 4294901760
    %v535 = vsub.f32 %v390, %v534
    %v536 = vand.u32 %v535, 4294901760
    %v537 = vsub.f32 %v535, %v536
    %v538 = vand.u32 %v537, 4294901760
    %539 = vmatpush1.msra.mxu0 %v538
    %540 = vmatprep.subr.mxu0 0.0
    %v541 = vand.u32 %v391, 4294901760
    %v542 = vsub.f32 %v391, %v541
    %v543 = vand.u32 %v542, 4294901760
    %v544 = vsub.f32 %v542, %v543
    %v545 = vand.u32 %v544, 4294901760
    %546 = vmatpush1.msra.mxu0 %v545
    %547 = vmatprep.subr.mxu0 0.0
    %v548 = vand.u32 %v392, 4294901760
    %v549 = vsub.f32 %v392, %v548
    %v550 = vand.u32 %v549, 4294901760
    %v551 = vsub.f32 %v549, %v550
    %v552 = vand.u32 %v551, 4294901760
    %553 = vmatpush1.msra.mxu0 %v552
    %554 = vmatprep.subr.mxu0 0.0
    %v555 = vand.u32 %v393, 4294901760
    %v556 = vsub.f32 %v393, %v555
    %v557 = vand.u32 %v556, 4294901760
    %v558 = vsub.f32 %v556, %v557
    %v559 = vand.u32 %v558, 4294901760
    %560 = vmatpush1.msra.mxu0 %v559
    %561 = vmatprep.subr.mxu0 0.0
    %v562 = vand.u32 %v394, 4294901760
    %v563 = vsub.f32 %v394, %v562
    %v564 = vand.u32 %v563, 4294901760
    %v565 = vsub.f32 %v563, %v564
    %v566 = vand.u32 %v565, 4294901760
    %567 = vmatpush1.msra.mxu0 %v566
    %568 = vmatprep.subr.mxu0 0.0
    %v569 = vand.u32 %v395, 4294901760
    %v570 = vsub.f32 %v395, %v569
    %v571 = vand.u32 %v570, 4294901760
    %v572 = vsub.f32 %v570, %v571
    %v573 = vand.u32 %v572, 4294901760
    %574 = vmatpush1.msra.mxu0 %v573
    %575 = vmatprep.subr.mxu0 0.0
    %v576 = vand.u32 %v396, 4294901760
    %v577 = vsub.f32 %v396, %v576
    %v578 = vand.u32 %v577, 4294901760
    %v579 = vsub.f32 %v577, %v578
    %v580 = vand.u32 %v579, 4294901760
    %581 = vmatpush1.msra.mxu0 %v580
    %582 = vmatprep.subr.mxu0 0.0
    %v583 = vand.u32 %v397, 4294901760
    %v584 = vsub.f32 %v397, %v583
    %v585 = vand.u32 %v584, 4294901760
    %v586 = vsub.f32 %v584, %v585
    %v587 = vand.u32 %v586, 4294901760
    %588 = vmatpush1.msra.mxu0 %v587
    %589 = vmatprep.subr.mxu0 0.0
    %v590 = vand.u32 %v398, 4294901760
    %v591 = vsub.f32 %v398, %v590
    %v592 = vand.u32 %v591, 4294901760
    %v593 = vsub.f32 %v591, %v592
    %v594 = vand.u32 %v593, 4294901760
    %595 = vmatpush1.msra.mxu0 %v594
    %596 = vmatprep.subr.mxu0 0.0
    %v597 = vand.u32 %v399, 4294901760
    %v598 = vsub.f32 %v399, %v597
    %v599 = vand.u32 %v598, 4294901760
    %v600 = vsub.f32 %v598, %v599
    %v601 = vand.u32 %v600, 4294901760
    %602 = vmatpush1.msra.mxu0 %v601
    %603 = vmatprep.subr.mxu0 0.0
    %604 = vmatpush1.msra.mxu0 0.0
    %605 = vmatprep.subr.mxu0 0.0
    %606 = vmatpush1.msra.mxu0 0.0
    %607 = vmatprep.subr.mxu0 0.0
    %608 = vmatpush1.msra.mxu0 0.0
    %609 = vmatprep.subr.mxu0 0.0
    %610 = vmatpush1.msra.mxu0 0.0
    %611 = vmatprep.subr.mxu0 0.0
    %612 = vmatpush1.msra.mxu0 0.0
    %613 = vmatprep.subr.mxu0 0.0
    %614 = vmatpush1.msra.mxu0 0.0
    %615 = vmatprep.subr.mxu0 0.0
    %616 = vmatpush1.msra.mxu0 0.0
    %617 = vmatprep.subr.mxu0 0.0
    %618 = vmatpush1.msra.mxu0 0.0
    %619 = vmatprep.subr.mxu0 0.0
    %620 = vmatpush1.msra.mxu0 0.0
    %621 = vmatprep.subr.mxu0 0.0
    %622 = vmatpush1.msra.mxu0 0.0
    %623 = vmatprep.subr.mxu0 0.0
    %624 = vmatpush1.msra.mxu0 0.0
    %625 = vmatprep.subr.mxu0 0.0
    %626 = vmatpush1.msra.mxu0 0.0
    %627 = vmatprep.subr.mxu0 0.0
    %628 = vmatpush1.msra.mxu0 0.0
    %629 = vmatprep.subr.mxu0 0.0
    %630 = vmatpush1.msra.mxu0 0.0
    %631 = vmatprep.subr.mxu0 0.0
    %632 = vmatpush1.msra.mxu0 0.0
    %633 = vmatprep.subr.mxu0 0.0
    %634 = vmatpush1.msra.mxu0 0.0
    %635 = vmatprep.mubr.f32.mxu0 0.0
    %v636 = vand.u32 %v383, 4294901760
    %637 = vmatmul.mubr.f32.gmra.mrb[0].mxu0 %v636
    %v638 = vpop.f32.mrb[0].mxu0
    %v639 = vadd.f32 %v488, %v638
    %v640 = vpop.f32.mrb[0].mxu0
    %641 = vdwg.mxu0
    %642 = vmatprep.subr.mxu0 0.0
    %v643 = vand.u32 %v384, 4294901760
    %v644 = vsub.f32 %v384, %v643
    %645 = vmatpush1.msra.mxu0 %v644
    %646 = vmatprep.subr.mxu0 0.0
    %v647 = vand.u32 %v385, 4294901760
    %v648 = vsub.f32 %v385, %v647
    %649 = vmatpush1.msra.mxu0 %v648
    %650 = vmatprep.subr.mxu0 0.0
    %v651 = vand.u32 %v386, 4294901760
    %v652 = vsub.f32 %v386, %v651
    %653 = vmatpush1.msra.mxu0 %v652
    %654 = vmatprep.subr.mxu0 0.0
    %v655 = vand.u32 %v387, 4294901760
    %v656 = vsub.f32 %v387, %v655
    %657 = vmatpush1.msra.mxu0 %v656
    %658 = vmatprep.subr.mxu0 0.0
    %v659 = vand.u32 %v388, 4294901760
    %v660 = vsub.f32 %v388, %v659
    %661 = vmatpush1.msra.mxu0 %v660
    %662 = vmatprep.subr.mxu0 0.0
    %v663 = vand.u32 %v389, 4294901760
    %v664 = vsub.f32 %v389, %v663
    %665 = vmatpush1.msra.mxu0 %v664
    %666 = vmatprep.subr.mxu0 0.0
    %v667 = vand.u32 %v390, 4294901760
    %v668 = vsub.f32 %v390, %v667
    %669 = vmatpush1.msra.mxu0 %v668
    %670 = vmatprep.subr.mxu0 0.0
    %v671 = vand.u32 %v391, 4294901760
    %v672 = vsub.f32 %v391, %v671
    %673 = vmatpush1.msra.mxu0 %v672
    %674 = vmatprep.subr.mxu0 0.0
    %v675 = vand.u32 %v392, 4294901760
    %v676 = vsub.f32 %v392, %v675
    %677 = vmatpush1.msra.mxu0 %v676
    %678 = vmatprep.subr.mxu0 0.0
    %v679 = vand.u32 %v393, 4294901760
    %v680 = vsub.f32 %v393, %v679
    %681 = vmatpush1.msra.mxu0 %v680
    %682 = vmatprep.subr.mxu0 0.0
    %v683 = vand.u32 %v394, 4294901760
    %v684 = vsub.f32 %v394, %v683
    %685 = vmatpush1.msra.mxu0 %v684
    %686 = vmatprep.subr.mxu0 0.0
    %v687 = vand.u32 %v395, 4294901760
    %v688 = vsub.f32 %v395, %v687
    %689 = vmatpush1.msra.mxu0 %v688
    %690 = vmatprep.subr.mxu0 0.0
    %v691 = vand.u32 %v396, 4294901760
    %v692 = vsub.f32 %v396, %v691
    %693 = vmatpush1.msra.mxu0 %v692
    %694 = vmatprep.subr.mxu0 0.0
    %v695 = vand.u32 %v397, 4294901760
    %v696 = vsub.f32 %v397, %v695
    %697 = vmatpush1.msra.mxu0 %v696
    %698 = vmatprep.subr.mxu0 0.0
    %v699 = vand.u32 %v398, 4294901760
    %v700 = vsub.f32 %v398, %v699
    %701 = vmatpush1.msra.mxu0 %v700
    %702 = vmatprep.subr.mxu0 0.0
    %v703 = vand.u32 %v399, 4294901760
    %v704 = vsub.f32 %v399, %v703
    %705 = vmatpush1.msra.mxu0 %v704
    %706 = vmatprep.subr.mxu0 0.0
    %707 = vmatpush1.msra.mxu0 0.0
    %708 = vmatprep.subr.mxu0 0.0
    %709 = vmatpush1.msra.mxu0 0.0
    %710 = vmatprep.subr.mxu0 0.0
    %711 = vmatpush1.msra.mxu0 0.0
    %712 = vmatprep.subr.mxu0 0.0
    %713 = vmatpush1.msra.mxu0 0.0
    %714 = vmatprep.subr.mxu0 0.0
    %715 = vmatpush1.msra.mxu0 0.0
    %716 = vmatprep.subr.mxu0 0.0
    %717 = vmatpush1.msra.mxu0 0.0
    %718 = vmatprep.subr.mxu0 0.0
    %719 = vmatpush1.msra.mxu0 0.0
    %720 = vmatprep.subr.mxu0 0.0
    %721 = vmatpush1.msra.mxu0 0.0
    %722 = vmatprep.subr.mxu0 0.0
    %723 = vmatpush1.msra.mxu0 0.0
    %724 = vmatprep.subr.mxu0 0.0
    %725 = vmatpush1.msra.mxu0 0.0
    %726 = vmatprep.subr.mxu0 0.0
    %727 = vmatpush1.msra.mxu0 0.0
    %728 = vmatprep.subr.mxu0 0.0
    %729 = vmatpush1.msra.mxu0 0.0
    %730 = vmatprep.subr.mxu0 0.0
    %731 = vmatpush1.msra.mxu0 0.0
    %732 = vmatprep.subr.mxu0 0.0
    %733 = vmatpush1.msra.mxu0 0.0
    %734 = vmatprep.subr.mxu0 0.0
    %735 = vmatpush1.msra.mxu0 0.0
    %736 = vmatprep.subr.mxu0 0.0
    %737 = vmatpush1.msra.mxu0 0.0
    %738 = vmatprep.mubr.f32.mxu0 0.0
    %v739 = vand.u32 %v383, 4294901760
    %v740 = vsub.f32 %v383, %v739
    %741 = vmatmul.mubr.f32.gmra.mrb[0].mxu0 %v740
    %v742 = vpop.f32.mrb[0].mxu0
    %v743 = vadd.f32 %v639, %v742
    %v744 = vpop.f32.mrb[0].mxu0
    %745 = vdwg.mxu0
    %746 = vmatprep.subr.mxu0 0.0
    %v747 = vand.u32 %v384, 4294901760
    %748 = vmatpush1.msra.mxu0 %v747
    %749 = vmatprep.subr.mxu0 0.0
    %v750 = vand.u32 %v385, 4294901760
    %751 = vmatpush1.msra.mxu0 %v750
    %752 = vmatprep.subr.mxu0 0.0
    %v753 = vand.u32 %v386, 4294901760
    %754 = vmatpush1.msra.mxu0 %v753
    %755 = vmatprep.subr.mxu0 0.0
    %v756 = vand.u32 %v387, 4294901760
    %757 = vmatpush1.msra.mxu0 %v756
    %758 = vmatprep.subr.mxu0 0.0
    %v759 = vand.u32 %v388, 4294901760
    %760 = vmatpush1.msra.mxu0 %v759
    %761 = vmatprep.subr.mxu0 0.0
    %v762 = vand.u32 %v389, 4294901760
    %763 = vmatpush1.msra.mxu0 %v762
    %764 = vmatprep.subr.mxu0 0.0
    %v765 = vand.u32 %v390, 4294901760
    %766 = vmatpush1.msra.mxu0 %v765
    %767 = vmatprep.subr.mxu0 0.0
    %v768 = vand.u32 %v391, 4294901760
    %769 = vmatpush1.msra.mxu0 %v768
    %770 = vmatprep.subr.mxu0 0.0
    %v771 = vand.u32 %v392, 4294901760
    %772 = vmatpush1.msra.mxu0 %v771
    %773 = vmatprep.subr.mxu0 0.0
    %v774 = vand.u32 %v393, 4294901760
    %775 = vmatpush1.msra.mxu0 %v774
    %776 = vmatprep.subr.mxu0 0.0
    %v777 = vand.u32 %v394, 4294901760
    %778 = vmatpush1.msra.mxu0 %v777
    %779 = vmatprep.subr.mxu0 0.0
    %v780 = vand.u32 %v395, 4294901760
    %781 = vmatpush1.msra.mxu0 %v780
    %782 = vmatprep.subr.mxu0 0.0
    %v783 = vand.u32 %v396, 4294901760
    %784 = vmatpush1.msra.mxu0 %v783
    %785 = vmatprep.subr.mxu0 0.0
    %v786 = vand.u32 %v397, 4294901760
    %787 = vmatpush1.msra.mxu0 %v786
    %788 = vmatprep.subr.mxu0 0.0
    %v789 = vand.u32 %v398, 4294901760
    %790 = vmatpush1.msra.mxu0 %v789
    %791 = vmatprep.subr.mxu0 0.0
    %v792 = vand.u32 %v399, 4294901760
    %793 = vmatpush1.msra.mxu0 %v792
    %794 = vmatprep.subr.mxu0 0.0
    %795 = vmatpush1.msra.mxu0 0.0
    %796 = vmatprep.subr.mxu0 0.0
    %797 = vmatpush1.msra.mxu0 0.0
    %798 = vmatprep.subr.mxu0 0.0
    %799 = vmatpush1.msra.mxu0 0.0
    %800 = vmatprep.subr.mxu0 0.0
    %801 = vmatpush1.msra.mxu0 0.0
    %802 = vmatprep.subr.mxu0 0.0
    %803 = vmatpush1.msra.mxu0 0.0
    %804 = vmatprep.subr.mxu0 0.0
    %805 = vmatpush1.msra.mxu0 0.0
    %806 = vmatprep.subr.mxu0 0.0
    %807 = vmatpush1.msra.mxu0 0.0
    %808 = vmatprep.subr.mxu0 0.0
    %809 = vmatpush1.msra.mxu0 0.0
    %810 = vmatprep.subr.mxu0 0.0
    %811 = vmatpush1.msra.mxu0 0.0
    %812 = vmatprep.subr.mxu0 0.0
    %813 = vmatpush1.msra.mxu0 0.0
    %814 = vmatprep.subr.mxu0 0.0
    %815 = vmatpush1.msra.mxu0 0.0
    %816 = vmatprep.subr.mxu0 0.0
    %817 = vmatpush1.msra.mxu0 0.0
    %818 = vmatprep.subr.mxu0 0.0
    %819 = vmatpush1.msra.mxu0 0.0
    %820 = vmatprep.subr.mxu0 0.0
    %821 = vmatpush1.msra.mxu0 0.0
    %822 = vmatprep.subr.mxu0 0.0
    %823 = vmatpush1.msra.mxu0 0.0
    %824 = vmatprep.subr.mxu0 0.0
    %825 = vmatpush1.msra.mxu0 0.0
    %826 = vmatprep.mubr.f32.mxu0 0.0
    %v827 = vand.u32 %v383, 4294901760
    %v828 = vsub.f32 %v383, %v827
    %v829 = vand.u32 %v828, 4294901760
    %830 = vmatmul.mubr.f32.gmra.mrb[0].mxu0 %v829
    %v831 = vpop.f32.mrb[0].mxu0
    %v832 = vadd.f32 %v743, %v831
    %v833 = vpop.f32.mrb[0].mxu0
    %834 = vdwg.mxu0
    %835 = vmatprep.subr.mxu0 0.0
    %v836 = vand.u32 %v384, 4294901760
    %v837 = vsub.f32 %v384, %v836
    %v838 = vand.u32 %v837, 4294901760
    %839 = vmatpush1.msra.mxu0 %v838
    %840 = vmatprep.subr.mxu0 0.0
    %v841 = vand.u32 %v385, 4294901760
    %v842 = vsub.f32 %v385, %v841
    %v843 = vand.u32 %v842, 4294901760
    %844 = vmatpush1.msra.mxu0 %v843
    %845 = vmatprep.subr.mxu0 0.0
    %v846 = vand.u32 %v386, 4294901760
    %v847 = vsub.f32 %v386, %v846
    %v848 = vand.u32 %v847, 4294901760
    %849 = vmatpush1.msra.mxu0 %v848
    %850 = vmatprep.subr.mxu0 0.0
    %v851 = vand.u32 %v387, 4294901760
    %v852 = vsub.f32 %v387, %v851
    %v853 = vand.u32 %v852, 4294901760
    %854 = vmatpush1.msra.mxu0 %v853
    %855 = vmatprep.subr.mxu0 0.0
    %v856 = vand.u32 %v388, 4294901760
    %v857 = vsub.f32 %v388, %v856
    %v858 = vand.u32 %v857, 4294901760
    %859 = vmatpush1.msra.mxu0 %v858
    %860 = vmatprep.subr.mxu0 0.0
    %v861 = vand.u32 %v389, 4294901760
    %v862 = vsub.f32 %v389, %v861
    %v863 = vand.u32 %v862, 4294901760
    %864 = vmatpush1.msra.mxu0 %v863
    %865 = vmatprep.subr.mxu0 0.0
    %v866 = vand.u32 %v390, 4294901760
    %v867 = vsub.f32 %v390, %v866
    %v868 = vand.u32 %v867, 4294901760
    %869 = vmatpush1.msra.mxu0 %v868
    %870 = vmatprep.subr.mxu0 0.0
    %v871 = vand.u32 %v391, 4294901760
    %v872 = vsub.f32 %v391, %v871
    %v873 = vand.u32 %v872, 4294901760
    %874 = vmatpush1.msra.mxu0 %v873
    %875 = vmatprep.subr.mxu0 0.0
    %v876 = vand.u32 %v392, 4294901760
    %v877 = vsub.f32 %v392, %v876
    %v878 = vand.u32 %v877, 4294901760
    %879 = vmatpush1.msra.mxu0 %v878
    %880 = vmatprep.subr.mxu0 0.0
    %v881 = vand.u32 %v393, 4294901760
    %v882 = vsub.f32 %v393, %v881
    %v883 = vand.u32 %v882, 4294901760
    %884 = vmatpush1.msra.mxu0 %v883
    %885 = vmatprep.subr.mxu0 0.0
    %v886 = vand.u32 %v394, 4294901760
    %v887 = vsub.f32 %v394, %v886
    %v888 = vand.u32 %v887, 4294901760
    %889 = vmatpush1.msra.mxu0 %v888
    %890 = vmatprep.subr.mxu0 0.0
    %v891 = vand.u32 %v395, 4294901760
    %v892 = vsub.f32 %v395, %v891
    %v893 = vand.u32 %v892, 4294901760
    %894 = vmatpush1.msra.mxu0 %v893
    %895 = vmatprep.subr.mxu0 0.0
    %v896 = vand.u32 %v396, 4294901760
    %v897 = vsub.f32 %v396, %v896
    %v898 = vand.u32 %v897, 4294901760
    %899 = vmatpush1.msra.mxu0 %v898
    %900 = vmatprep.subr.mxu0 0.0
    %v901 = vand.u32 %v397, 4294901760
    %v902 = vsub.f32 %v397, %v901
    %v903 = vand.u32 %v902, 4294901760
    %904 = vmatpush1.msra.mxu0 %v903
    %905 = vmatprep.subr.mxu0 0.0
    %v906 = vand.u32 %v398, 4294901760
    %v907 = vsub.f32 %v398, %v906
    %v908 = vand.u32 %v907, 4294901760
    %909 = vmatpush1.msra.mxu0 %v908
    %910 = vmatprep.subr.mxu0 0.0
    %v911 = vand.u32 %v399, 4294901760
    %v912 = vsub.f32 %v399, %v911
    %v913 = vand.u32 %v912, 4294901760
    %914 = vmatpush1.msra.mxu0 %v913
    %915 = vmatprep.subr.mxu0 0.0
    %916 = vmatpush1.msra.mxu0 0.0
    %917 = vmatprep.subr.mxu0 0.0
    %918 = vmatpush1.msra.mxu0 0.0
    %919 = vmatprep.subr.mxu0 0.0
    %920 = vmatpush1.msra.mxu0 0.0
    %921 = vmatprep.subr.mxu0 0.0
    %922 = vmatpush1.msra.mxu0 0.0
    %923 = vmatprep.subr.mxu0 0.0
    %924 = vmatpush1.msra.mxu0 0.0
    %925 = vmatprep.subr.mxu0 0.0
    %926 = vmatpush1.msra.mxu0 0.0
    %927 = vmatprep.subr.mxu0 0.0
    %928 = vmatpush1.msra.mxu0 0.0
    %929 = vmatprep.subr.mxu0 0.0
    %930 = vmatpush1.msra.mxu0 0.0
    %931 = vmatprep.subr.mxu0 0.0
    %932 = vmatpush1.msra.mxu0 0.0
    %933 = vmatprep.subr.mxu0 0.0
    %934 = vmatpush1.msra.mxu0 0.0
    %935 = vmatprep.subr.mxu0 0.0
    %936 = vmatpush1.msra.mxu0 0.0
    %937 = vmatprep.subr.mxu0 0.0
    %938 = vmatpush1.msra.mxu0 0.0
    %939 = vmatprep.subr.mxu0 0.0
    %940 = vmatpush1.msra.mxu0 0.0
    %941 = vmatprep.subr.mxu0 0.0
    %942 = vmatpush1.msra.mxu0 0.0
    %943 = vmatprep.subr.mxu0 0.0
    %944 = vmatpush1.msra.mxu0 0.0
    %945 = vmatprep.subr.mxu0 0.0
    %946 = vmatpush1.msra.mxu0 0.0
    %947 = vmatprep.mubr.f32.mxu0 0.0
    %v948 = vand.u32 %v383, 4294901760
    %949 = vmatmul.mubr.f32.gmra.mrb[0].mxu0 %v948
    %v950 = vpop.f32.mrb[0].mxu0
    %v951 = vadd.f32 %v832, %v950
    %v952 = vpop.f32.mrb[0].mxu0
    %953 = vdwg.mxu0
    %954 = vmatprep.subr.mxu0 0.0
    %v955 = vand.u32 %v384, 4294901760
    %956 = vmatpush1.msra.mxu0 %v955
    %957 = vmatprep.subr.mxu0 0.0
    %v958 = vand.u32 %v385, 4294901760
    %959 = vmatpush1.msra.mxu0 %v958
    %960 = vmatprep.subr.mxu0 0.0
    %v961 = vand.u32 %v386, 4294901760
    %962 = vmatpush1.msra.mxu0 %v961
    %963 = vmatprep.subr.mxu0 0.0
    %v964 = vand.u32 %v387, 4294901760
    %965 = vmatpush1.msra.mxu0 %v964
    %966 = vmatprep.subr.mxu0 0.0
    %v967 = vand.u32 %v388, 4294901760
    %968 = vmatpush1.msra.mxu0 %v967
    %969 = vmatprep.subr.mxu0 0.0
    %v970 = vand.u32 %v389, 4294901760
    %971 = vmatpush1.msra.mxu0 %v970
    %972 = vmatprep.subr.mxu0 0.0
    %v973 = vand.u32 %v390, 4294901760
    %974 = vmatpush1.msra.mxu0 %v973
    %975 = vmatprep.subr.mxu0 0.0
    %v976 = vand.u32 %v391, 4294901760
    %977 = vmatpush1.msra.mxu0 %v976
    %978 = vmatprep.subr.mxu0 0.0
    %v979 = vand.u32 %v392, 4294901760
    %980 = vmatpush1.msra.mxu0 %v979
    %981 = vmatprep.subr.mxu0 0.0
    %v982 = vand.u32 %v393, 4294901760
    %983 = vmatpush1.msra.mxu0 %v982
    %984 = vmatprep.subr.mxu0 0.0
    %v985 = vand.u32 %v394, 4294901760
    %986 = vmatpush1.msra.mxu0 %v985
    %987 = vmatprep.subr.mxu0 0.0
    %v988 = vand.u32 %v395, 4294901760
    %989 = vmatpush1.msra.mxu0 %v988
    %990 = vmatprep.subr.mxu0 0.0
    %v991 = vand.u32 %v396, 4294901760
    %992 = vmatpush1.msra.mxu0 %v991
    %993 = vmatprep.subr.mxu0 0.0
    %v994 = vand.u32 %v397, 4294901760
    %995 = vmatpush1.msra.mxu0 %v994
    %996 = vmatprep.subr.mxu0 0.0
    %v997 = vand.u32 %v398, 4294901760
    %998 = vmatpush1.msra.mxu0 %v997
    %999 = vmatprep.subr.mxu0 0.0
    %v1000 = vand.u32 %v399, 4294901760
    %1001 = vmatpush1.msra.mxu0 %v1000
    %1002 = vmatprep.subr.mxu0 0.0
    %1003 = vmatpush1.msra.mxu0 0.0
    %1004 = vmatprep.subr.mxu0 0.0
    %1005 = vmatpush1.msra.mxu0 0.0
    %1006 = vmatprep.subr.mxu0 0.0
    %1007 = vmatpush1.msra.mxu0 0.0
    %1008 = vmatprep.subr.mxu0 0.0
    %1009 = vmatpush1.msra.mxu0 0.0
    %1010 = vmatprep.subr.mxu0 0.0
    %1011 = vmatpush1.msra.mxu0 0.0
    %1012 = vmatprep.subr.mxu0 0.0
    %1013 = vmatpush1.msra.mxu0 0.0
    %1014 = vmatprep.subr.mxu0 0.0
    %1015 = vmatpush1.msra.mxu0 0.0
    %1016 = vmatprep.subr.mxu0 0.0
    %1017 = vmatpush1.msra.mxu0 0.0
    %1018 = vmatprep.subr.mxu0 0.0
    %1019 = vmatpush1.msra.mxu0 0.0
    %1020 = vmatprep.subr.mxu0 0.0
    %1021 = vmatpush1.msra.mxu0 0.0
    %1022 = vmatprep.subr.mxu0 0.0
    %1023 = vmatpush1.msra.mxu0 0.0
    %1024 = vmatprep.subr.mxu0 0.0
    %1025 = vmatpush1.msra.mxu0 0.0
    %1026 = vmatprep.subr.mxu0 0.0
    %1027 = vmatpush1.msra.mxu0 0.0
    %1028 = vmatprep.subr.mxu0 0.0
    %1029 = vmatpush1.msra.mxu0 0.0
    %1030 = vmatprep.subr.mxu0 0.0
    %1031 = vmatpush1.msra.mxu0 0.0
    %1032 = vmatprep.subr.mxu0 0.0
    %1033 = vmatpush1.msra.mxu0 0.0
    %1034 = vmatprep.mubr.f32.mxu0 0.0
    %v1035 = vand.u32 %v383, 4294901760
    %1036 = vmatmul.mubr.f32.gmra.mrb[0].mxu0 %v1035
    %v1037 = vpop.f32.mrb[0].mxu0
    %v1038 = vadd.f32 %v951, %v1037
    %v1039 = vpop.f32.mrb[0].mxu0
    %1040 = vdwg.mxu0
    %v1041 = vrcp.pop %v1038
    %v1042 = vmul.f32 %v1038, %v1041
    %v1043 = vsub.f32 2.0, %v1042
    %v1044 = vmul.f32 %v1041, %v1043
    %v1045 = vmul.f32 %v383, %v1044
    %v1046 = vld [vmem:[%s9] sm:$0x1]
    %v1048 = vlaneseq
    %v1049 = vshrl.u32 %v1048, 7
    %v1050 = vsub.s32 0, %v1049
    %v1051 = vrot.slane %v1046, %v1050
    %v1053 = vmul.f32 %v368, %v1051
    %v1054 = vadd.f32 %v1045, %v1053
    %1055 = vst [vmem:[#allocation11] sm:$0xff] %v1054
    // Predicated region
    $region62: #{tpu_custom_call.1} parent=1 // pred_check
      _
    $region63: #{tpu_custom_call.1} parent=1 // pred_check_branch
      %1057 = sbr.rel (0) target = $region65
    $region64: #{tpu_custom_call.1} parent=1 // pred_region
      %s1059 = ssub.s32 128, 128
      %1060 = vsyncadd [#allocation4], %s1059
      %s1062 = sshll.u32 [#allocation11], 4
      %s1063 = int_to_ptr.vmem [resolvable:$true] %s1062
      %1065 = dma.vmem_to_hbm [thread:$0]  %s1063, 128, %s10, [#allocation4]
    $region65: #{tpu_custom_call.1} parent=1 // pred_fallthru
      _
    // Predicated region
    $region66: #{tpu_custom_call.1} parent=1 // pred_check
      _
    $region67: #{tpu_custom_call.1} parent=1 // pred_check_branch
      %1067 = sbr.rel (0) target = $region69
    $region68: #{tpu_custom_call.1} parent=1 // pred_region
      %1068 = dma.done [#allocation4], 128
    $region69: #{tpu_custom_call.1} parent=1 // pred_fallthru
      _
    %1069 = vsyncpa [#allocation3], 1
    %1070 = vsyncpa [#allocation6], 1
    %1071 = vsyncpa [#allocation9], 1
    %1072 = vsyncpa [#allocation4], 1

</llo_original>
